<compile_context>
chip_gen: v5e
topology: v5e:2x2
jax: 0.10.0
libtpu: 0.0.40
codegen_flags: <defaults>
</compile_context>

<pallas_src>
import functools

import jax
import jax.numpy as jnp
from jax.experimental import pallas as pl
from jax.experimental.pallas import tpu as pltpu


# Row indices inside the packed (8, L) mask/weight array.
_M_DY = 0    # 1.0 where row  h <= H-2   (valid first-order dy)
_M_DX = 1    # 1.0 where col  w <= W-2   (valid first-order dx)
_W_DYY = 2   # (h <= H-3) / (NC*(H-2)*W)
_W_DYX = 3   # (w <= W-2) / (NC*(H-1)*(W-1))
_W_DXX = 4   # (w <= W-3) / (NC*H*(W-2))
_W_DXY = 5   # (h <= H-2) / (NC*(H-1)*(W-1))


def _second_grad_kernel(m_ref, x_ref, out_ref, *, W: int, penalty: str,
                        nc: int, B: int):
    """m_ref: (8, L) f32 masks/weights (resident).  x_ref: (B, L) input block
    (one flattened (H, W) slice per row).  out_ref: (8, 128) f32 VMEM block,
    the per-step partial weighted sum broadcast across all lanes."""
    i = pl.program_id(0)

    x = x_ref[...].astype(jnp.float32)                      # (B, L)

    # In-kernel mask for the ragged last block (replaces the old jnp.pad):
    # out-of-bounds rows of a partial block are UNSPECIFIED, so select-zero
    # them before any arithmetic (select, not multiply, in case of NaN/Inf
    # garbage bits).  Only emitted when nc % B != 0 (static decision).
    if nc % B != 0:
        rows = jax.lax.broadcasted_iota(jnp.int32, x.shape, 0)
        x = jnp.where(rows < (nc - i * B), x, jnp.float32(0.0))

    def row(r):   # (1, L) static slice of the resident mask array
        return m_ref[r:r + 1, :]

    if penalty == 'l2':
        # Squaring removes the sign, so the reference's outer abs is redundant.
        def f(t):
            return t * t
    else:  # 'l1' (and the PyTorch fall-through) use plain abs
        f = jnp.abs

    # ---- dy-derived terms first (dy dies before dx is live) ----------------
    dy = jnp.abs(jnp.roll(x, -W, axis=1) - x) * row(_M_DY)
    acc = f(jnp.roll(dy, -W, axis=1) - dy) * row(_W_DYY)          # dyy
    acc = acc + f(jnp.roll(dy, -1, axis=1) - dy) * row(_W_DYX)    # dyx

    # ---- dx-derived terms (x dies after dx) ---------------------------------
    dx = jnp.abs(jnp.roll(x, -1, axis=1) - x) * row(_M_DX)
    acc = acc + f(jnp.roll(dx, -1, axis=1) - dx) * row(_W_DXX)    # dxx
    acc = acc + f(jnp.roll(dx, -W, axis=1) - dx) * row(_W_DXY)    # dxy

    # Single fused reduction per step; partial is written as a full lane-dense
    # (8, 128) block (unmasked stores), host picks element [0, 0].
    s = jnp.sum(acc)
    out_ref[...] = jnp.full((8, 128), s, dtype=jnp.float32)


def second_grad(pred: jax.Array, penalty: str = 'l1',
                *, target_block_bytes: int = 1 << 20) -> jax.Array:
    """JAX/Pallas equivalent of second_Grad(penalty)(pred).  pred: (N, C, H, W)."""
    N, C, H, W = pred.shape
    assert H >= 3 and W >= 3, "need at least 3 pixels along each spatial axis"
    nc = N * C
    L = H * W

    # Free reshape: one flattened spatial slice per row (lane-dense last axis).
    x = pred.reshape(nc, L)

    # Rows (slices) per grid step: sized to ~target_block_bytes.  Either a
    # multiple of 8 (sublane alignment; ragged last block masked in-kernel) or
    # the full NC extent when NC < 8 (a full-dim block needs no alignment).
    per_slice_bytes = L * 4
    B = max(1, min(nc, target_block_bytes // per_slice_bytes))
    if nc >= 8:
        B = max(8, (B // 8) * 8)
    else:
        B = nc
    G = -(-nc // B)

    # Masks / pre-scaled weights shared by every grid step (true nc in counts).
    f32 = jnp.float32
    j = jnp.arange(L, dtype=jnp.int32)
    h_idx = j // W
    w_idx = j % W
    m_dy = (h_idx <= H - 2).astype(f32)
    m_dx = (w_idx <= W - 2).astype(f32)
    w_dyy = (h_idx <= H - 3).astype(f32) / float(nc * (H - 2) * W)
    w_dyx = m_dx / float(nc * (H - 1) * (W - 1))
    w_dxx = (w_idx <= W - 3).astype(f32) / float(nc * H * (W - 2))
    w_dxy = m_dy / float(nc * (H - 1) * (W - 1))
    zeros = jnp.zeros((L,), f32)
    masks = jnp.stack([m_dy, m_dx, w_dyy, w_dyx, w_dxx, w_dxy, zeros, zeros],
                      axis=0)                                   # (8, L)

    kernel = functools.partial(_second_grad_kernel, W=W, penalty=penalty,
                               nc=nc, B=B)

    partials = pl.pallas_call(
        kernel,
        out_shape=jax.ShapeDtypeStruct((G, 8, 128), jnp.float32),
        grid_spec=pltpu.PrefetchScalarGridSpec(
            num_scalar_prefetch=0,
            grid=(G,),
            in_specs=[
                pl.BlockSpec((8, L), lambda i: (0, 0)),   # masks (resident)
                pl.BlockSpec((B, L), lambda i: (i, 0)),   # B slices per step
            ],
            # Each step owns a disjoint, lane-dense (8, 128) output block, so
            # the grid axis can be sharded across TensorCores on v7x.
            out_specs=pl.BlockSpec((None, 8, 128), lambda i: (i, 0, 0)),
        ),
        compiler_params=pltpu.CompilerParams(
            dimension_semantics=("parallel",),
            vmem_limit_bytes=32 * 1024 * 1024,
        ),
    )(masks, x)

    # partials already carry the 1/count weights -> just sum and divide by 4.
    return jnp.sum(partials[:, 0, 0]) / 4.0


def _second_grad_ref(pred, penalty='l1'):
    """Pure-JAX reference mirroring the PyTorch forward, for verification."""
    dy = jnp.abs(pred[:, :, 1:, :] - pred[:, :, :-1, :])
    dx = jnp.abs(pred[:, :, :, 1:] - pred[:, :, :, :-1])
    dyy = jnp.abs(dy[:, :, 1:, :] - dy[:, :, :-1, :])
    dyx = jnp.abs(dy[:, :, :, 1:] - dy[:, :, :, :-1])
    dxx = jnp.abs(dx[:, :, :, 1:] - dx[:, :, :, :-1])
    dxy = jnp.abs(dx[:, :, 1:, :] - dx[:, :, :-1, :])
    if penalty == 'l2':
        dyy, dyx, dxx, dxy = dyy * dyy, dyx * dyx, dxx * dxx, dxy * dxy
    d = jnp.mean(dyy) + jnp.mean(dyx) + jnp.mean(dxx) + jnp.mean(dxy)
    return d / 4.0


if __name__ == "__main__":
    key = jax.random.PRNGKey(0)
    k1, k2, k3 = jax.random.split(key, 3)

    # Small deterministic inputs consistent with NCHW prediction maps:
    #   shape 1: aligned, single full block
    #   shape 2: odd spatial dims + NC < 8 (full-dim block)
    #   shape 3: NC = 10 -> ragged last block, exercises the in-kernel mask
    preds = [
        jax.random.normal(k1, (2, 4, 16, 16), dtype=jnp.float32),
        jax.random.normal(k2, (1, 3, 13, 11), dtype=jnp.float32),
        jax.random.normal(k3, (2, 5, 16, 16), dtype=jnp.float32),
    ]

    ok = True
    for pred in preds:
        for penalty in ('l1', 'l2'):
            out = jax.block_until_ready(second_grad(pred, penalty=penalty))
            ref = jax.block_until_ready(_second_grad_ref(pred, penalty=penalty))
            if not bool(jnp.allclose(out, ref, rtol=1e-5, atol=1e-6)):
                ok = False
                print(f"MISMATCH shape={pred.shape} penalty={penalty}: "
                      f"kernel={out} ref={ref}")

    if ok:
        print("KERNEL_OK")
</pallas_src>

<mosaic_0001>
module attributes {stable_mosaic.version = 11 : i64} {
  func.func @_second_grad_kernel(%arg0: i32, %arg1: memref<8x256xf32, #tpu.memory_space<vmem>>, %arg2: memref<8x256xf32, #tpu.memory_space<vmem>>, %arg3: memref<1x8x128xf32, #tpu.memory_space<vmem>>) attributes {dimension_semantics = [#tpu.dimension_semantics<parallel>], iteration_bounds = array<i64: 1>, scalar_prefetch = 0 : i64, scratch_operands = 0 : i64, tpu.core_type = #tpu.core_type<tc>, window_params = [{pipeline_mode = #tpu.pipeline_mode<synchronous>, transform_indices = @transform_0, window_bounds = array<i64: 8, 256>}, {transform_indices = @transform_1, window_bounds = array<i64: 8, 256>}, {transform_indices = @transform_2, window_bounds = array<i64: 1, 8, 128>}]} {
    %c0 = arith.constant 0 : index
    %c0_0 = arith.constant 0 : index
    %0 = vector.load %arg2[%c0, %c0_0] : memref<8x256xf32, #tpu.memory_space<vmem>>, vector<8x256xf32>
    %1 = vector.extract_strided_slice %0 {offsets = [0, 16], sizes = [8, 240], strides = [1, 1]} : vector<8x256xf32> to vector<8x240xf32>
    %2 = vector.extract_strided_slice %0 {offsets = [0, 0], sizes = [8, 16], strides = [1, 1]} : vector<8x256xf32> to vector<8x16xf32>
    %3 = tpu.concatenate %1, %2 in 1 : vector<8x240xf32>, vector<8x16xf32> -> vector<8x256xf32>
    %4 = arith.subf %3, %0 : vector<8x256xf32>
    %5 = math.absf %4 : vector<8x256xf32>
    %c0_1 = arith.constant 0 : index
    %c0_2 = arith.constant 0 : index
    %6 = vector.load %arg1[%c0_1, %c0_2] : memref<8x256xf32, #tpu.memory_space<vmem>>, vector<1x256xf32>
    %7 = vector.broadcast %6 : vector<1x256xf32> to vector<8x256xf32>
    %8 = arith.mulf %5, %7 : vector<8x256xf32>
    %9 = vector.extract_strided_slice %8 {offsets = [0, 16], sizes = [8, 240], strides = [1, 1]} : vector<8x256xf32> to vector<8x240xf32>
    %10 = vector.extract_strided_slice %8 {offsets = [0, 0], sizes = [8, 16], strides = [1, 1]} : vector<8x256xf32> to vector<8x16xf32>
    %11 = tpu.concatenate %9, %10 in 1 : vector<8x240xf32>, vector<8x16xf32> -> vector<8x256xf32>
    %12 = arith.subf %11, %8 : vector<8x256xf32>
    %13 = math.absf %12 : vector<8x256xf32>
    %c2 = arith.constant 2 : index
    %c0_3 = arith.constant 0 : index
    %14 = vector.load %arg1[%c2, %c0_3] : memref<8x256xf32, #tpu.memory_space<vmem>>, vector<1x256xf32>
    %15 = vector.broadcast %14 : vector<1x256xf32> to vector<8x256xf32>
    %16 = arith.mulf %13, %15 : vector<8x256xf32>
    %17 = vector.extract_strided_slice %8 {offsets = [0, 1], sizes = [8, 255], strides = [1, 1]} : vector<8x256xf32> to vector<8x255xf32>
    %18 = vector.extract_strided_slice %8 {offsets = [0, 0], sizes = [8, 1], strides = [1, 1]} : vector<8x256xf32> to vector<8x1xf32>
    %19 = tpu.concatenate %17, %18 in 1 : vector<8x255xf32>, vector<8x1xf32> -> vector<8x256xf32>
    %20 = arith.subf %19, %8 : vector<8x256xf32>
    %21 = math.absf %20 : vector<8x256xf32>
    %c3 = arith.constant 3 : index
    %c0_4 = arith.constant 0 : index
    %22 = vector.load %arg1[%c3, %c0_4] : memref<8x256xf32, #tpu.memory_space<vmem>>, vector<1x256xf32>
    %23 = vector.broadcast %22 : vector<1x256xf32> to vector<8x256xf32>
    %24 = arith.mulf %21, %23 : vector<8x256xf32>
    %25 = arith.addf %16, %24 : vector<8x256xf32>
    %26 = vector.extract_strided_slice %0 {offsets = [0, 1], sizes = [8, 255], strides = [1, 1]} : vector<8x256xf32> to vector<8x255xf32>
    %27 = vector.extract_strided_slice %0 {offsets = [0, 0], sizes = [8, 1], strides = [1, 1]} : vector<8x256xf32> to vector<8x1xf32>
    %28 = tpu.concatenate %26, %27 in 1 : vector<8x255xf32>, vector<8x1xf32> -> vector<8x256xf32>
    %29 = arith.subf %28, %0 : vector<8x256xf32>
    %30 = math.absf %29 : vector<8x256xf32>
    %c1 = arith.constant 1 : index
    %c0_5 = arith.constant 0 : index
    %31 = vector.load %arg1[%c1, %c0_5] : memref<8x256xf32, #tpu.memory_space<vmem>>, vector<1x256xf32>
    %32 = vector.broadcast %31 : vector<1x256xf32> to vector<8x256xf32>
    %33 = arith.mulf %30, %32 : vector<8x256xf32>
    %34 = vector.extract_strided_slice %33 {offsets = [0, 1], sizes = [8, 255], strides = [1, 1]} : vector<8x256xf32> to vector<8x255xf32>
    %35 = vector.extract_strided_slice %33 {offsets = [0, 0], sizes = [8, 1], strides = [1, 1]} : vector<8x256xf32> to vector<8x1xf32>
    %36 = tpu.concatenate %34, %35 in 1 : vector<8x255xf32>, vector<8x1xf32> -> vector<8x256xf32>
    %37 = arith.subf %36, %33 : vector<8x256xf32>
    %38 = math.absf %37 : vector<8x256xf32>
    %c4 = arith.constant 4 : index
    %c0_6 = arith.constant 0 : index
    %39 = vector.load %arg1[%c4, %c0_6] : memref<8x256xf32, #tpu.memory_space<vmem>>, vector<1x256xf32>
    %40 = vector.broadcast %39 : vector<1x256xf32> to vector<8x256xf32>
    %41 = arith.mulf %38, %40 : vector<8x256xf32>
    %42 = arith.addf %25, %41 : vector<8x256xf32>
    %43 = vector.extract_strided_slice %33 {offsets = [0, 16], sizes = [8, 240], strides = [1, 1]} : vector<8x256xf32> to vector<8x240xf32>
    %44 = vector.extract_strided_slice %33 {offsets = [0, 0], sizes = [8, 16], strides = [1, 1]} : vector<8x256xf32> to vector<8x16xf32>
    %45 = tpu.concatenate %43, %44 in 1 : vector<8x240xf32>, vector<8x16xf32> -> vector<8x256xf32>
    %46 = arith.subf %45, %33 : vector<8x256xf32>
    %47 = math.absf %46 : vector<8x256xf32>
    %c5 = arith.constant 5 : index
    %c0_7 = arith.constant 0 : index
    %48 = vector.load %arg1[%c5, %c0_7] : memref<8x256xf32, #tpu.memory_space<vmem>>, vector<1x256xf32>
    %49 = vector.broadcast %48 : vector<1x256xf32> to vector<8x256xf32>
    %50 = arith.mulf %47, %49 : vector<8x256xf32>
    %51 = arith.addf %42, %50 : vector<8x256xf32>
    %52 = vector.shape_cast %51 : vector<8x256xf32> to vector<1x8x256xf32>
    %cst = arith.constant dense<0.000000e+00> : vector<1xf32>
    %53 = vector.multi_reduction <add>, %52, %cst [1, 2] : vector<1x8x256xf32> to vector<1xf32>
    %54 = vector.shape_cast %53 : vector<1xf32> to vector<1x1x1xf32>
    %55 = vector.extract %54[0, 0, 0] : f32 from vector<1x1x1xf32>
    %56 = vector.broadcast %55 : f32 to vector<8x128xf32>
    %c0_8 = arith.constant 0 : index
    %c0_9 = arith.constant 0 : index
    %c0_10 = arith.constant 0 : index
    %57 = vector.load %arg3[%c0_8, %c0_9, %c0_10] : memref<1x8x128xf32, #tpu.memory_space<vmem>>, vector<1x8x128xf32>
    %58 = vector.shape_cast %57 : vector<1x8x128xf32> to vector<8x128xf32>
    %59 = vector.shape_cast %56 : vector<8x128xf32> to vector<1x8x128xf32>
    tpu.vector_store %arg3[%c0_8, %c0_9, %c0_10], %59 {strides = array<i32>} : memref<1x8x128xf32, #tpu.memory_space<vmem>>, vector<1x8x128xf32>,
    return
  }
  func.func @transform_0(%arg0: i32) -> (i32, i32) {
    %c0_i32 = arith.constant 0 : i32
    %c0_i32_0 = arith.constant 0 : i32
    %c0_i32_1 = arith.constant 0 : i32
    return %c0_i32, %c0_i32_0 : i32, i32
  }
  func.func @transform_1(%arg0: i32) -> (i32, i32) {
    %c0_i32 = arith.constant 0 : i32
    %c0_i32_0 = arith.constant 0 : i32
    return %arg0, %c0_i32 : i32, i32
  }
  func.func @transform_2(%arg0: i32) -> (i32, i32, i32) {
    %c0_i32 = arith.constant 0 : i32
    %c0_i32_0 = arith.constant 0 : i32
    %c0_i32_1 = arith.constant 0 : i32
    return %arg0, %c0_i32, %c0_i32_0 : i32, i32, i32
  }
}

</mosaic_0001>

<llo_original>
// kernel: tpu_custom_call.1
$region0: #{tpu_custom_call.1}
  #allocation0 [shape = 'u32[]', space=smem, size = 0x4, offset = 0x4, fixed_abs, tag = 'smem constant byte address 0x4 - core index']
  #allocation1 [shape = 'u32[72,128]{1,0:T(1,128)}', space=vmem, size = 0x9000, scoped, tag = 'internal scratch']
  %s0 = inlined_call_operand.hbm [shape: f32[8,256], index: 0, kind: input, shape index: {}]
  %s1 = inlined_call_operand.hbm [shape: f32[8,256], index: 1, kind: input, shape index: {}]
  %s2 = inlined_call_operand.hbm [shape: f32[1,8,128], index: 2, kind: output, shape index: {}]
  %s3 = sld [smem:[#allocation0]]
  $region26: #{tpu_custom_call.1} parent=0
    _
  %s5 = ssub.s32 1, %s3
  %s6 = scalar_select 0, %s5, %s3
  $region1: #{tpu_custom_call.1} parent=0
    #allocation2 [shape = 'u8[8192]{0}', space=vmem, size = 0x2000, scoped, tag = 'input window, operand 0, single buffered']
    #allocation3 [shape = 's32[1]{0}', space=sflag, size = 0x4, scoped, tag = 'scoped memory for tpu_custom_call.1']
    #allocation4 [shape = 's32[1]{0}', space=sflag, size = 0x4, scoped, tag = 'scoped memory for tpu_custom_call.1']
    #allocation5 [shape = 'u8[8192]{0}', space=vmem, size = 0x2000, scoped, tag = 'input window, operand 1, single buffered']
    #allocation6 [shape = 's32[1]{0}', space=sflag, size = 0x4, scoped, tag = 'scoped memory for tpu_custom_call.1']
    #allocation7 [shape = 'u8[4096]{0}', space=vmem, size = 0x1000, scoped, tag = 'output window, operand 0, single buffered']
    %7 = vsyncpa [#allocation3], 0
    %8 = vsyncpa [#allocation6], 0
    %9 = vsyncpa [#allocation4], 0
    // Predicated region
    $region2: #{tpu_custom_call.1} parent=1 // pred_check
      _
    $region3: #{tpu_custom_call.1} parent=1 // pred_check_branch
      %11 = sbr.rel (0) target = $region5
    $region4: #{tpu_custom_call.1} parent=1 // pred_region
      %13 = vsyncadd [#allocation3], 0
      %s15 = sshll.u32 %s0, 4
      %s16 = int_to_ptr.hbm [resolvable:$true] %s15
      %s17 = sshll.u32 [#allocation2], 4
      %s18 = int_to_ptr.vmem [resolvable:$true] %s17
      %20 = dma.hbm_to_vmem [thread:$0]  %s16, 256, %s18, [#allocation3]
    $region5: #{tpu_custom_call.1} parent=1 // pred_fallthru
      _
    // Predicated region
    $region6: #{tpu_custom_call.1} parent=1 // pred_check
      _
    $region7: #{tpu_custom_call.1} parent=1 // pred_check_branch
      %22 = sbr.rel (0) target = $region9
    $region8: #{tpu_custom_call.1} parent=1 // pred_region
      %24 = vsyncadd [#allocation6], 0
      %s26 = sshll.u32 %s1, 4
      %s27 = int_to_ptr.hbm [resolvable:$true] %s26
      %s28 = sshll.u32 [#allocation5], 4
      %s29 = int_to_ptr.vmem [resolvable:$true] %s28
      %31 = dma.hbm_to_vmem [thread:$0]  %s27, 256, %s29, [#allocation6]
    $region9: #{tpu_custom_call.1} parent=1 // pred_fallthru
      _
    // Predicated region
    $region10: #{tpu_custom_call.1} parent=1 // pred_check
      _
    $region11: #{tpu_custom_call.1} parent=1 // pred_check_branch
      %33 = sbr.rel (0) target = $region13
    $region12: #{tpu_custom_call.1} parent=1 // pred_region
      %35 = dma.done [#allocation3], 256
    $region13: #{tpu_custom_call.1} parent=1 // pred_fallthru
      _
    // Predicated region
    $region14: #{tpu_custom_call.1} parent=1 // pred_check
      _
    $region15: #{tpu_custom_call.1} parent=1 // pred_check_branch
      %37 = sbr.rel (0) target = $region17
    $region16: #{tpu_custom_call.1} parent=1 // pred_region
      %39 = dma.done [#allocation6], 256
    $region17: #{tpu_custom_call.1} parent=1 // pred_fallthru
      _
    %v40 = vld [vmem:[#allocation5] sm:$0xff]
    %v41 = vld [vmem:[#allocation5 + $0x8] sm:$0xff]
    %44 = vrot.lane.b32.xlu0 %v40, 112
    %v45 = vpop.permute.xlu0 %44
    %46 = vrot.lane.b32.xlu0 %v41, 112
    %v47 = vpop.permute.xlu0 %46
    %vm48 = vcmask 916480
    %v49 = vsel %vm48, %v45, %v47
    %v53 = vsel %vm48, %v47, %v45
    %v54 = vsub.f32 %v49, %v40
    %v55 = vsub.f32 %v53, %v41
    %v56 = vand.u32 2147483647, %v54
    %v57 = vand.u32 2147483647, %v55
    %v58 = vld [vmem:[#allocation2] ss:$8 sm:$0x3]
    %v60 = vperm.slane %v58, 0
    %v61 = vperm.slane %v58, 1
    %v64 = vmul.f32 %v56, %v60
    %v65 = vmul.f32 %v57, %v61
    %68 = vrot.lane.b32.xlu0 %v64, 112
    %v69 = vpop.permute.xlu0 %68
    %70 = vrot.lane.b32.xlu0 %v65, 112
    %v71 = vpop.permute.xlu0 %70
    %v72 = vsel %vm48, %v69, %v71
    %v76 = vsel %vm48, %v71, %v69
    %v77 = vsub.f32 %v72, %v64
    %v78 = vsub.f32 %v76, %v65
    %v79 = vand.u32 2147483647, %v77
    %v80 = vand.u32 2147483647, %v78
    %s81 = scalar_lea.vmem [#allocation2], 2
    %v82 = vld [vmem:[%s81] ss:$8 sm:$0x3]
    %v84 = vperm.slane %v82, 0
    %v85 = vperm.slane %v82, 1
    %v88 = vmul.f32 %v79, %v84
    %v89 = vmul.f32 %v80, %v85
    %90 = vrot.lane.b32.xlu0 %v64, 127
    %v91 = vpop.permute.xlu0 %90
    %92 = vrot.lane.b32.xlu0 %v65, 127
    %v93 = vpop.permute.xlu0 %92
    %vm94 = vcmask 1039360
    %v95 = vsel %vm94, %v91, %v93
    %v99 = vsel %vm94, %v93, %v91
    %v100 = vsub.f32 %v95, %v64
    %v101 = vsub.f32 %v99, %v65
    %v102 = vand.u32 2147483647, %v100
    %v103 = vand.u32 2147483647, %v101
    %s104 = scalar_lea.vmem [#allocation2], 3
    %v105 = vld [vmem:[%s104] ss:$8 sm:$0x3]
    %v107 = vperm.slane %v105, 0
    %v108 = vperm.slane %v105, 1
    %v111 = vmul.f32 %v102, %v107
    %v112 = vmul.f32 %v103, %v108
    %v113 = vadd.f32 %v88, %v111
    %v114 = vadd.f32 %v89, %v112
    %115 = vrot.lane.b32.xlu0 %v40, 127
    %v116 = vpop.permute.xlu0 %115
    %117 = vrot.lane.b32.xlu0 %v41, 127
    %v118 = vpop.permute.xlu0 %117
    %v119 = vsel %vm94, %v116, %v118
    %v123 = vsel %vm94, %v118, %v116
    %v124 = vsub.f32 %v119, %v40
    %v125 = vsub.f32 %v123, %v41
    %v126 = vand.u32 2147483647, %v124
    %v127 = vand.u32 2147483647, %v125
    %s128 = scalar_lea.vmem [#allocation2], 1
    %v129 = vld [vmem:[%s128] ss:$8 sm:$0x3]
    %v131 = vperm.slane %v129, 0
    %v132 = vperm.slane %v129, 1
    %v135 = vmul.f32 %v126, %v131
    %v136 = vmul.f32 %v127, %v132
    %139 = vrot.lane.b32.xlu0 %v135, 127
    %v140 = vpop.permute.xlu0 %139
    %141 = vrot.lane.b32.xlu0 %v136, 127
    %v142 = vpop.permute.xlu0 %141
    %v143 = vsel %vm94, %v140, %v142
    %v147 = vsel %vm94, %v142, %v140
    %v148 = vsub.f32 %v143, %v135
    %v149 = vsub.f32 %v147, %v136
    %v150 = vand.u32 2147483647, %v148
    %v151 = vand.u32 2147483647, %v149
    %s152 = scalar_lea.vmem [#allocation2], 4
    %v153 = vld [vmem:[%s152] ss:$8 sm:$0x3]
    %v155 = vperm.slane %v153, 0
    %v156 = vperm.slane %v153, 1
    %v159 = vmul.f32 %v150, %v155
    %v160 = vmul.f32 %v151, %v156
    %v161 = vadd.f32 %v113, %v159
    %v162 = vadd.f32 %v114, %v160
    %163 = vrot.lane.b32.xlu0 %v135, 112
    %v164 = vpop.permute.xlu0 %163
    %165 = vrot.lane.b32.xlu0 %v136, 112
    %v166 = vpop.permute.xlu0 %165
    %v167 = vsel %vm48, %v164, %v166
    %v171 = vsel %vm48, %v166, %v164
    %v172 = vsub.f32 %v167, %v135
    %v173 = vsub.f32 %v171, %v136
    %v174 = vand.u32 2147483647, %v172
    %v175 = vand.u32 2147483647, %v173
    %s176 = scalar_lea.vmem [#allocation2], 5
    %v177 = vld [vmem:[%s176] ss:$8 sm:$0x3]
    %v179 = vperm.slane %v177, 0
    %v180 = vperm.slane %v177, 1
    %v183 = vmul.f32 %v174, %v179
    %v184 = vmul.f32 %v175, %v180
    %v185 = vadd.f32 %v161, %v183
    %v186 = vadd.f32 %v162, %v184
    %v187 = vadd.f32 %v185, %v186
    %188 = vadd.xlane.f32.xlu0 %v187
    %v189 = vpop.xlane.xlu0 %188
    %v190 = vrot.slane %v189, 4
    %v191 = vadd.f32 %v189, %v190
    %v192 = vrot.slane %v191, 2
    %v193 = vadd.f32 %v191, %v192
    %v194 = vrot.slane %v193, 1
    %v195 = vadd.f32 %v193, %v194
    %s196 = vtos %v195
    %v197 = vstv %s196
    %198 = vst [vmem:[#allocation7] sm:$0xff] %v197
    // Predicated region
    $region18: #{tpu_custom_call.1} parent=1 // pred_check
      _
    $region19: #{tpu_custom_call.1} parent=1 // pred_check_branch
      %200 = sbr.rel (0) target = $region21
    $region20: #{tpu_custom_call.1} parent=1 // pred_region
      %202 = vsyncadd [#allocation4], 0
      %s204 = sshll.u32 [#allocation7], 4
      %s205 = int_to_ptr.vmem [resolvable:$true] %s204
      %s206 = sshll.u32 %s2, 4
      %s207 = int_to_ptr.hbm [resolvable:$true] %s206
      %209 = dma.vmem_to_hbm [thread:$0]  %s205, 128, %s207, [#allocation4]
    $region21: #{tpu_custom_call.1} parent=1 // pred_fallthru
      _
    // Predicated region
    $region22: #{tpu_custom_call.1} parent=1 // pred_check
      _
    $region23: #{tpu_custom_call.1} parent=1 // pred_check_branch
      %211 = sbr.rel (0) target = $region25
    $region24: #{tpu_custom_call.1} parent=1 // pred_region
      %213 = dma.done [#allocation4], 128
    $region25: #{tpu_custom_call.1} parent=1 // pred_fallthru
      _
    %214 = vsyncpa [#allocation3], 1
    %215 = vsyncpa [#allocation6], 1
    %216 = vsyncpa [#allocation4], 1

</llo_original>
